<compile_context>
chip_gen: v5e
topology: v5e:2x2
jax: 0.10.0
libtpu: 0.0.40
codegen_flags: <defaults>
</compile_context>

<pallas_src>
import functools

import jax
import jax.numpy as jnp
from jax.experimental import pallas as pl
from jax.experimental.pallas import tpu as pltpu


def _sigmoid(z):
    # sigmoid(z) == 0.5 * tanh(0.5 * z) + 0.5  -> one EUP op instead of exp + divide.
    return 0.5 * jnp.tanh(0.5 * z) + 0.5


def autoencoder_kernel(x_ref, wg_ref, bg_ref, wh_ref, bh_ref, out_ref):
    """out = sigmoid(sigmoid(x @ Wg + bg) @ Wh + bh); bf16 MXU operands, f32 accumulate."""
    x = x_ref[...].astype(jnp.bfloat16)                                   # (TM, Nq) cast in-kernel
    # Encoder: sigmoid(x @ Wg + bg)
    enc = jnp.dot(x, wg_ref[...], preferred_element_type=jnp.float32)     # (TM, K)  MXU, f32 acc
    enc = _sigmoid(enc + bg_ref[...])                                     # f32 VPU/EUP
    # Decoder: sigmoid(enc @ Wh + bh)
    dec = jnp.dot(enc.astype(jnp.bfloat16), wh_ref[...],
                  preferred_element_type=jnp.float32)                     # (TM, Nq) MXU, f32 acc
    out_ref[...] = _sigmoid(dec + bh_ref[...]).astype(out_ref.dtype)


@functools.partial(jax.jit, static_argnames=("tm", "out_dtype"))
def autoencoder_forward(x, w_g, b_g, w_h, b_h, *, tm=1024, out_dtype=None):
    """x: (B, num_question); w_g: (num_question, k); b_g: (k,);
       w_h: (k, num_question); b_h: (num_question,). Returns (B, num_question)."""
    B, Nq = x.shape
    K = w_g.shape[1]
    if out_dtype is None:
        out_dtype = x.dtype

    # Batch tile: multiple of 16 (bf16 sublane packing), no larger than B rounded up.
    tm = max(16, min(int(tm), ((B + 15) // 16) * 16))
    tm = ((tm + 15) // 16) * 16

    # Weights to bf16 (tiny one-time cost, they're small and DMA'd once); biases f32 (1, dim).
    wg_b = w_g.astype(jnp.bfloat16)
    wh_b = w_h.astype(jnp.bfloat16)
    bg2 = b_g.reshape(1, K).astype(jnp.float32)
    bh2 = b_h.reshape(1, Nq).astype(jnp.float32)

    # Rough VMEM estimate (double-buffered x/out tiles + weights + intermediates).
    out_itemsize = jnp.dtype(out_dtype).itemsize
    vmem_est = (2 * tm * Nq * x.dtype.itemsize          # x tiles (native dtype)
                + 2 * tm * Nq * out_itemsize            # out tiles
                + 2 * (2 * Nq * K * 2 + (K + Nq) * 4)   # weights + biases (double-buffered)
                + tm * (K + Nq) * 4 + tm * Nq * 2)      # f32/bf16 intermediates
    compiler_kwargs = {"dimension_semantics": ("parallel",)}
    if vmem_est > 12 * 1024 * 1024:  # v5e scoped-VMEM default is 16 MiB
        compiler_kwargs["vmem_limit_bytes"] = int(min(2 * vmem_est, 64 * 1024 * 1024))

    grid = (pl.cdiv(B, tm),)  # partial edge block handled by Pallas (rows independent)
    out = pl.pallas_call(
        autoencoder_kernel,
        out_shape=jax.ShapeDtypeStruct((B, Nq), out_dtype),
        grid=grid,
        in_specs=[
            pl.BlockSpec((tm, Nq), lambda i: (i, 0)),   # activations: tiled over batch
            pl.BlockSpec((Nq, K), lambda i: (0, 0)),    # Wg: VMEM-resident
            pl.BlockSpec((1, K), lambda i: (0, 0)),     # bg: VMEM-resident
            pl.BlockSpec((K, Nq), lambda i: (0, 0)),    # Wh: VMEM-resident
            pl.BlockSpec((1, Nq), lambda i: (0, 0)),    # bh: VMEM-resident
        ],
        out_specs=pl.BlockSpec((tm, Nq), lambda i: (i, 0)),
        compiler_params=pltpu.CompilerParams(**compiler_kwargs),
    )(x, wg_b, bg2, wh_b, bh2)

    return out


def reference_forward_f32(x, w_g, b_g, w_h, b_h):
    enc = jax.nn.sigmoid(x @ w_g + b_g)
    return jax.nn.sigmoid(enc @ w_h + b_h)


def reference_forward_bf16(x, w_g, b_g, w_h, b_h):
    """Same operand-precision policy as the kernel (bf16 matmul inputs, f32 accumulate)."""
    enc = jnp.dot(x.astype(jnp.bfloat16), w_g.astype(jnp.bfloat16),
                  preferred_element_type=jnp.float32)
    enc = jax.nn.sigmoid(enc + b_g)
    dec = jnp.dot(enc.astype(jnp.bfloat16), w_h.astype(jnp.bfloat16),
                  preferred_element_type=jnp.float32)
    return jax.nn.sigmoid(dec + b_h)


if __name__ == "__main__":
    # Small shapes consistent with the module (num_question, k). B is deliberately NOT a
    # multiple of the tile so the cdiv-grid / masked-edge-block path is exercised
    # (grid = 3 steps at TM=256, last block partial).
    B = 600
    NUM_QUESTION = 128
    K = 32

    key = jax.random.PRNGKey(0)
    kx, kg, kbg, kh, kbh = jax.random.split(key, 5)

    # Deterministic synthetic parameters (~PyTorch Linear init scale).
    x = jax.random.uniform(kx, (B, NUM_QUESTION), jnp.float32)
    lim_g = 1.0 / jnp.sqrt(NUM_QUESTION)
    lim_h = 1.0 / jnp.sqrt(K)
    w_g = jax.random.uniform(kg, (NUM_QUESTION, K), jnp.float32, -lim_g, lim_g)
    b_g = jax.random.uniform(kbg, (K,), jnp.float32, -lim_g, lim_g)
    w_h = jax.random.uniform(kh, (K, NUM_QUESTION), jnp.float32, -lim_h, lim_h)
    b_h = jax.random.uniform(kbh, (NUM_QUESTION,), jnp.float32, -lim_h, lim_h)

    out = autoencoder_forward(x, w_g, b_g, w_h, b_h, tm=256)
    out = jax.block_until_ready(out)
    assert out.shape == (B, NUM_QUESTION)
    assert out.dtype == jnp.float32

    # Tight check vs a reference using the same bf16-operand / f32-accumulate policy.
    ref_bf16 = reference_forward_bf16(x, w_g, b_g, w_h, b_h)
    assert jnp.allclose(out, ref_bf16, atol=2e-3, rtol=2e-3), "mismatch vs bf16 reference"

    # Loose check vs the full-f32 reference (module semantics preserved).
    ref_f32 = reference_forward_f32(x, w_g, b_g, w_h, b_h)
    assert jnp.allclose(out, ref_f32, atol=2e-2, rtol=2e-2), "mismatch vs f32 reference"

    print("KERNEL_OK")
</pallas_src>

<mosaic_0001>
module attributes {stable_mosaic.version = 11 : i64} {
  func.func @autoencoder_kernel(%arg0: i32, %arg1: memref<256x128xf32, #tpu.memory_space<vmem>>, %arg2: memref<128x32xbf16, #tpu.memory_space<vmem>>, %arg3: memref<1x32xf32, #tpu.memory_space<vmem>>, %arg4: memref<32x128xbf16, #tpu.memory_space<vmem>>, %arg5: memref<1x128xf32, #tpu.memory_space<vmem>>, %arg6: memref<256x128xf32, #tpu.memory_space<vmem>>) attributes {dimension_semantics = [#tpu.dimension_semantics<parallel>], iteration_bounds = array<i64: 3>, scalar_prefetch = 0 : i64, scratch_operands = 0 : i64, tpu.core_type = #tpu.core_type<tc>, window_params = [{transform_indices = @transform_0, window_bounds = array<i64: 256, 128>}, {pipeline_mode = #tpu.pipeline_mode<synchronous>, transform_indices = @transform_1, window_bounds = array<i64: 128, 32>}, {pipeline_mode = #tpu.pipeline_mode<synchronous>, transform_indices = @transform_2, window_bounds = array<i64: 1, 32>}, {pipeline_mode = #tpu.pipeline_mode<synchronous>, transform_indices = @transform_3, window_bounds = array<i64: 32, 128>}, {pipeline_mode = #tpu.pipeline_mode<synchronous>, transform_indices = @transform_4, window_bounds = array<i64: 1, 128>}, {transform_indices = @transform_5, window_bounds = array<i64: 256, 128>}]} {
    %c0 = arith.constant 0 : index
    %c0_0 = arith.constant 0 : index
    %0 = vector.load %arg1[%c0, %c0_0] : memref<256x128xf32, #tpu.memory_space<vmem>>, vector<256x128xf32>
    %1 = arith.truncf %0 : vector<256x128xf32> to vector<256x128xbf16>
    %c0_1 = arith.constant 0 : index
    %c0_2 = arith.constant 0 : index
    %2 = vector.load %arg2[%c0_1, %c0_2] : memref<128x32xbf16, #tpu.memory_space<vmem>>, vector<128x32xbf16>
    %cst = arith.constant dense<0.000000e+00> : vector<256x32xf32>
    %3 = tpu.matmul %1, %2, %cst {dimension_numbers = #tpu.dot_dimension_numbers<[1], [0], [0], [1], [0, 0, 1, 1], [], []>} : vector<256x128xbf16>, vector<128x32xbf16>, vector<256x32xf32> -> vector<256x32xf32>
    %c0_3 = arith.constant 0 : index
    %c0_4 = arith.constant 0 : index
    %4 = vector.load %arg3[%c0_3, %c0_4] : memref<1x32xf32, #tpu.memory_space<vmem>>, vector<1x32xf32>
    %5 = vector.broadcast %4 : vector<1x32xf32> to vector<256x32xf32>
    %6 = arith.addf %3, %5 : vector<256x32xf32>
    %cst_5 = arith.constant 5.000000e-01 : f32
    %7 = vector.broadcast %cst_5 : f32 to vector<256x32xf32>
    %8 = arith.mulf %7, %6 : vector<256x32xf32>
    %9 = math.tanh %8 : vector<256x32xf32>
    %cst_6 = arith.constant 5.000000e-01 : f32
    %10 = vector.broadcast %cst_6 : f32 to vector<256x32xf32>
    %11 = arith.mulf %10, %9 : vector<256x32xf32>
    %cst_7 = arith.constant 5.000000e-01 : f32
    %12 = vector.broadcast %cst_7 : f32 to vector<256x32xf32>
    %13 = arith.addf %11, %12 : vector<256x32xf32>
    %14 = arith.truncf %13 : vector<256x32xf32> to vector<256x32xbf16>
    %c0_8 = arith.constant 0 : index
    %c0_9 = arith.constant 0 : index
    %15 = vector.load %arg4[%c0_8, %c0_9] : memref<32x128xbf16, #tpu.memory_space<vmem>>, vector<32x128xbf16>
    %cst_10 = arith.constant dense<0.000000e+00> : vector<256x128xf32>
    %16 = tpu.matmul %14, %15, %cst_10 {dimension_numbers = #tpu.dot_dimension_numbers<[1], [0], [0], [1], [0, 0, 1, 1], [], []>} : vector<256x32xbf16>, vector<32x128xbf16>, vector<256x128xf32> -> vector<256x128xf32>
    %c0_11 = arith.constant 0 : index
    %c0_12 = arith.constant 0 : index
    %17 = vector.load %arg5[%c0_11, %c0_12] : memref<1x128xf32, #tpu.memory_space<vmem>>, vector<1x128xf32>
    %18 = vector.broadcast %17 : vector<1x128xf32> to vector<256x128xf32>
    %19 = arith.addf %16, %18 : vector<256x128xf32>
    %cst_13 = arith.constant 5.000000e-01 : f32
    %20 = vector.broadcast %cst_13 : f32 to vector<256x128xf32>
    %21 = arith.mulf %20, %19 : vector<256x128xf32>
    %22 = math.tanh %21 : vector<256x128xf32>
    %cst_14 = arith.constant 5.000000e-01 : f32
    %23 = vector.broadcast %cst_14 : f32 to vector<256x128xf32>
    %24 = arith.mulf %23, %22 : vector<256x128xf32>
    %cst_15 = arith.constant 5.000000e-01 : f32
    %25 = vector.broadcast %cst_15 : f32 to vector<256x128xf32>
    %26 = arith.addf %24, %25 : vector<256x128xf32>
    %c0_16 = arith.constant 0 : index
    %c0_17 = arith.constant 0 : index
    %27 = vector.load %arg6[%c0_16, %c0_17] : memref<256x128xf32, #tpu.memory_space<vmem>>, vector<256x128xf32>
    tpu.vector_store %arg6[%c0_16, %c0_17], %26 {strides = array<i32>} : memref<256x128xf32, #tpu.memory_space<vmem>>, vector<256x128xf32>,
    return
  }
  func.func @transform_0(%arg0: i32) -> (i32, i32) {
    %c0_i32 = arith.constant 0 : i32
    %c0_i32_0 = arith.constant 0 : i32
    return %arg0, %c0_i32 : i32, i32
  }
  func.func @transform_1(%arg0: i32) -> (i32, i32) {
    %c0_i32 = arith.constant 0 : i32
    %c0_i32_0 = arith.constant 0 : i32
    %c0_i32_1 = arith.constant 0 : i32
    return %c0_i32, %c0_i32_0 : i32, i32
  }
  func.func @transform_2(%arg0: i32) -> (i32, i32) {
    %c0_i32 = arith.constant 0 : i32
    %c0_i32_0 = arith.constant 0 : i32
    %c0_i32_1 = arith.constant 0 : i32
    return %c0_i32, %c0_i32_0 : i32, i32
  }
  func.func @transform_3(%arg0: i32) -> (i32, i32) {
    %c0_i32 = arith.constant 0 : i32
    %c0_i32_0 = arith.constant 0 : i32
    %c0_i32_1 = arith.constant 0 : i32
    return %c0_i32, %c0_i32_0 : i32, i32
  }
  func.func @transform_4(%arg0: i32) -> (i32, i32) {
    %c0_i32 = arith.constant 0 : i32
    %c0_i32_0 = arith.constant 0 : i32
    %c0_i32_1 = arith.constant 0 : i32
    return %c0_i32, %c0_i32_0 : i32, i32
  }
  func.func @transform_5(%arg0: i32) -> (i32, i32) {
    %c0_i32 = arith.constant 0 : i32
    %c0_i32_0 = arith.constant 0 : i32
    return %arg0, %c0_i32 : i32, i32
  }
}

</mosaic_0001>

<llo_original>
// kernel: autoencoder_forward.1
$region0: #{autoencoder_forward.1}
  #allocation0 [shape = 'u32[]', space=smem, size = 0x4, offset = 0x4, fixed_abs, tag = 'smem constant byte address 0x4 - core index']
  #allocation1 [shape = 'u32[72,128]{1,0:T(1,128)}', space=vmem, size = 0x9000, scoped, tag = 'internal scratch']
  %s0 = inlined_call_operand.hbm [shape: f32[600,128], index: 0, kind: input, shape index: {}]
  %s1 = inlined_call_operand.vmem [shape: bf16[128,32], index: 1, kind: input, shape index: {}]
  %s2 = inlined_call_operand.vmem [shape: f32[1,32], index: 2, kind: input, shape index: {}]
  %s3 = inlined_call_operand.vmem [shape: bf16[32,128], index: 3, kind: input, shape index: {}]
  %s4 = inlined_call_operand.vmem [shape: f32[1,128], index: 4, kind: input, shape index: {}]
  %s5 = inlined_call_operand.hbm [shape: f32[600,128], index: 5, kind: output, shape index: {}]
  %s6 = sld [smem:[#allocation0]]
  $region57: #{autoencoder_forward.1} parent=0
    _
  %s8 = ssub.s32 1, %s6
  %s9 = scalar_select 0, %s8, %s6
  $region1: #{autoencoder_forward.1} parent=0
    #allocation2 [shape = 'u8[262144]{0}', space=vmem, size = 0x40000, scoped, tag = 'input window, operand 0']
    #allocation3 [shape = 's32[2]{0}', space=sflag, size = 0x8, scoped, tag = 'scoped memory for autoencoder_forward.1']
    #allocation4 [shape = 's32[2]{0}', space=sflag, size = 0x8, scoped, tag = 'scoped memory for autoencoder_forward.1']
    #allocation5 [shape = 'u8[262144]{0}', space=vmem, size = 0x40000, scoped, tag = 'output window, operand 0']
    %10 = vsyncpa [#allocation3], 0
    %s11 = scalar_lea.sflag [#allocation3], 1
    %12 = vsyncpa %s11, 0
    %13 = vsyncpa [#allocation4], 0
    %s14 = scalar_lea.sflag [#allocation4], 1
    %15 = vsyncpa %s14, 0
    loop: start=0, step=1, limit=5
    $region2: #{autoencoder_forward.1} parent=1 // loop_pre_header
      _
    $region3: #{autoencoder_forward.1} parent=1 // loop_header
      %s17 = sphi 0, %s21
      %p18 = scmp.ge.s32.totalorder %s17, 5
      %s27 = sphi 0, %s29
      %s30 = sphi 0, %s27
      %s31 = sphi 0, %s30
      %s47 = sphi 0, %s31
      %s51 = sphi 0, %s51
      %s53 = sphi 0, %s51
      %s54 = sphi 0, %s53
      %s68 = sphi 0, %s54
      %s72 = sphi 0, %s72
      %s74 = sphi 0, %s72
      %s75 = sphi 0, %s74
      %s89 = sphi 0, %s75
      %s93 = sphi 0, %s93
      %s95 = sphi 0, %s93
      %s96 = sphi 0, %s95
      %s110 = sphi 0, %s96
      %s114 = sphi 0, %s114
      %s116 = sphi 0, %s114
      %s117 = sphi 0, %s116
      %s131 = sphi 0, %s117
      %s137 = sphi 0, %s139
      %s140 = sphi 0, %s137
      %s141 = sphi 0, %s140
      %s157 = sphi 0, %s141
    $region4: #{autoencoder_forward.1} parent=1 // loop_header_branch
      %20 = sbr.rel (%p18) target = $region8
    $region5: #{autoencoder_forward.1} parent=1 // loop_body
      %s22 = ssub.s32 %s17, 1
      %s23 = ssub.s32 %s17, 2
      %s24 = sadd.s32 %s17, 1
      %s25 = ssub.s32 %s17, %s24
      %p26 = scmp.eq.s32.totalorder %s25, 0
      %s28 = sadd.s32 %s27, 1
      %s29 = scalar_select %p26, %s27, %s28
      %p32 = pneg %p26
      %p33 = scmp.eq.s32.totalorder %s17, 2
      %p34 = por %p32, %p33
      %p35 = scmp.ne.s32.totalorder %s27, %s30
      %p36 = scmp.eq.s32.totalorder %s17, 0
      %p37 = por %p35, %p36
      %p38 = scmp.ne.s32.totalorder %s27, %s30
      %p39 = scmp.eq.s32.totalorder %s22, 2
      %p40 = por %p38, %p39
      %p41 = scmp.ne.s32.totalorder %s30, %s31
      %p42 = scmp.eq.s32.totalorder %s22, 0
      %p43 = por %p41, %p42
      %p44 = scmp.ne.s32.totalorder %s30, %s31
      %p45 = scmp.eq.s32.totalorder %s23, 2
      %p46 = por %p44, %p45
      %p48 = scmp.ne.s32.totalorder %s31, %s47
      %p49 = scmp.eq.s32.totalorder %s23, 0
      %p50 = por %p48, %p49
      %s52 = sadd.s32 %s51, 1
      %p55 = scmp.eq.s32.totalorder %s17, 2
      %p56 = scmp.ne.s32.totalorder %s51, %s53
      %p57 = scmp.eq.s32.totalorder %s17, 0
      %p58 = por %p56, %p57
      %p59 = scmp.ne.s32.totalorder %s51, %s53
      %p60 = scmp.eq.s32.totalorder %s22, 2
      %p61 = por %p59, %p60
      %p62 = scmp.ne.s32.totalorder %s53, %s54
      %p63 = scmp.eq.s32.totalorder %s22, 0
      %p64 = por %p62, %p63
      %p65 = scmp.ne.s32.totalorder %s53, %s54
      %p66 = scmp.eq.s32.totalorder %s23, 2
      %p67 = por %p65, %p66
      %p69 = scmp.ne.s32.totalorder %s54, %s68
      %p70 = scmp.eq.s32.totalorder %s23, 0
      %p71 = por %p69, %p70
      %s73 = sadd.s32 %s72, 1
      %p76 = scmp.eq.s32.totalorder %s17, 2
      %p77 = scmp.ne.s32.totalorder %s72, %s74
      %p78 = scmp.eq.s32.totalorder %s17, 0
      %p79 = por %p77, %p78
      %p80 = scmp.ne.s32.totalorder %s72, %s74
      %p81 = scmp.eq.s32.totalorder %s22, 2
      %p82 = por %p80, %p81
      %p83 = scmp.ne.s32.totalorder %s74, %s75
      %p84 = scmp.eq.s32.totalorder %s22, 0
      %p85 = por %p83, %p84
      %p86 = scmp.ne.s32.totalorder %s74, %s75
      %p87 = scmp.eq.s32.totalorder %s23, 2
      %p88 = por %p86, %p87
      %p90 = scmp.ne.s32.totalorder %s75, %s89
      %p91 = scmp.eq.s32.totalorder %s23, 0
      %p92 = por %p90, %p91
      %s94 = sadd.s32 %s93, 1
      %p97 = scmp.eq.s32.totalorder %s17, 2
      %p98 = scmp.ne.s32.totalorder %s93, %s95
      %p99 = scmp.eq.s32.totalorder %s17, 0
      %p100 = por %p98, %p99
      %p101 = scmp.ne.s32.totalorder %s93, %s95
      %p102 = scmp.eq.s32.totalorder %s22, 2
      %p103 = por %p101, %p102
      %p104 = scmp.ne.s32.totalorder %s95, %s96
      %p105 = scmp.eq.s32.totalorder %s22, 0
      %p106 = por %p104, %p105
      %p107 = scmp.ne.s32.totalorder %s95, %s96
      %p108 = scmp.eq.s32.totalorder %s23, 2
      %p109 = por %p107, %p108
      %p111 = scmp.ne.s32.totalorder %s96, %s110
      %p112 = scmp.eq.s32.totalorder %s23, 0
      %p113 = por %p111, %p112
      %s115 = sadd.s32 %s114, 1
      %p118 = scmp.eq.s32.totalorder %s17, 2
      %p119 = scmp.ne.s32.totalorder %s114, %s116
      %p120 = scmp.eq.s32.totalorder %s17, 0
      %p121 = por %p119, %p120
      %p122 = scmp.ne.s32.totalorder %s114, %s116
      %p123 = scmp.eq.s32.totalorder %s22, 2
      %p124 = por %p122, %p123
      %p125 = scmp.ne.s32.totalorder %s116, %s117
      %p126 = scmp.eq.s32.totalorder %s22, 0
      %p127 = por %p125, %p126
      %p128 = scmp.ne.s32.totalorder %s116, %s117
      %p129 = scmp.eq.s32.totalorder %s23, 2
      %p130 = por %p128, %p129
      %p132 = scmp.ne.s32.totalorder %s117, %s131
      %p133 = scmp.eq.s32.totalorder %s23, 0
      %p134 = por %p132, %p133
      %s135 = ssub.s32 %s17, %s24
      %p136 = scmp.eq.s32.totalorder %s135, 0
      %s138 = sadd.s32 %s137, 1
      %s139 = scalar_select %p136, %s137, %s138
      %p142 = pneg %p136
      %p143 = scmp.eq.s32.totalorder %s17, 2
      %p144 = por %p142, %p143
      %p145 = scmp.ne.s32.totalorder %s137, %s140
      %p146 = scmp.eq.s32.totalorder %s17, 0
      %p147 = por %p145, %p146
      %p148 = scmp.ne.s32.totalorder %s137, %s140
      %p149 = scmp.eq.s32.totalorder %s22, 2
      %p150 = por %p148, %p149
      %p151 = scmp.ne.s32.totalorder %s140, %s141
      %p152 = scmp.eq.s32.totalorder %s22, 0
      %p153 = por %p151, %p152
      %p154 = scmp.ne.s32.totalorder %s140, %s141
      %p155 = scmp.eq.s32.totalorder %s23, 2
      %p156 = por %p154, %p155
      %p158 = scmp.ne.s32.totalorder %s141, %s157
      %p159 = scmp.eq.s32.totalorder %s23, 0
      %p160 = por %p158, %p159
      %p161 = scmp.le.s32.totalorder 1, %s17
      %p162 = scmp.lt.s32.totalorder %s17, 4
      %p163 = pnand %p161, %p162
      %p164 = pneg %p163
      // Predicated region
      $region9: #{autoencoder_forward.1} parent=5 // pred_check
        _
      $region10: #{autoencoder_forward.1} parent=5 // pred_check_branch
        %166 = sbr.rel (%p163) target = $region12
      $region11: #{autoencoder_forward.1} parent=5 // pred_region
        %s167 = ssub.s32 %s17, 1
        // Predicated region
        $region13: #{autoencoder_forward.1} parent=11 // pred_check
          %p168 = pneg %p64
        $region14: #{autoencoder_forward.1} parent=11 // pred_check_branch
          %170 = sbr.rel (%p168) target = $region16
        $region15: #{autoencoder_forward.1} parent=11 // pred_region
          _
        $region16: #{autoencoder_forward.1} parent=11 // pred_fallthru
          _
        // Predicated region
        $region17: #{autoencoder_forward.1} parent=11 // pred_check
          %p171 = pneg %p85
        $region18: #{autoencoder_forward.1} parent=11 // pred_check_branch
          %173 = sbr.rel (%p171) target = $region20
        $region19: #{autoencoder_forward.1} parent=11 // pred_region
          _
        $region20: #{autoencoder_forward.1} parent=11 // pred_fallthru
          _
        // Predicated region
        $region21: #{autoencoder_forward.1} parent=11 // pred_check
          %p174 = pneg %p106
        $region22: #{autoencoder_forward.1} parent=11 // pred_check_branch
          %176 = sbr.rel (%p174) target = $region24
        $region23: #{autoencoder_forward.1} parent=11 // pred_region
          _
        $region24: #{autoencoder_forward.1} parent=11 // pred_fallthru
          _
        // Predicated region
        $region25: #{autoencoder_forward.1} parent=11 // pred_check
          %p177 = pneg %p127
        $region26: #{autoencoder_forward.1} parent=11 // pred_check_branch
          %179 = sbr.rel (%p177) target = $region28
        $region27: #{autoencoder_forward.1} parent=11 // pred_region
          _
        $region28: #{autoencoder_forward.1} parent=11 // pred_fallthru
          _
      $region12: #{autoencoder_forward.1} parent=5 // pred_fallthru
        _
      %p180 = scmp.lt.s32.totalorder %s17, 3
      // Predicated region
      $region29: #{autoencoder_forward.1} parent=5 // pred_check
        %p181 = pneg %p180
      $region30: #{autoencoder_forward.1} parent=5 // pred_check_branch
        %183 = sbr.rel (%p181) target = $region32
      $region31: #{autoencoder_forward.1} parent=5 // pred_region
        // Predicated region
        $region33: #{autoencoder_forward.1} parent=31 // pred_check
          %p184 = pneg %p37
        $region34: #{autoencoder_forward.1} parent=31 // pred_check_branch
          %186 = sbr.rel (%p184) target = $region36
        $region35: #{autoencoder_forward.1} parent=31 // pred_region
          %s187 = sand.u32 %s27, 1
          %s188 = scalar_lea.sflag [#allocation3], %s187
          %s189 = sand.u32 %s27, 1
          %s190 = smul.addr %s189, 256
          %s191 = scalar_lea.vmem [#allocation2], %s190
          %s192 = smul.u32 32, %s17
          %s193 = ssub.s32 75, %s192
          %p194 = scmp.lt.s32.totalorder %s193, 32
          %s195 = scalar_select %p194, %s193, 32
          %s196 = smul.u32 8, %s195
          %s197 = ssub.s32 256, %s196
          %s198 = sshll.u32 %s197, 4
          %199 = vsyncadd %s188, %s198
          %p200 = scmp.ne.s32.totalorder 0, %s196
          %s201 = smul.addr %s192, 8
          %s202 = scalar_lea.hbm %s0, %s201
          %s203 = smul.u32 8, %s195
          %s204 = sshll.u32 %s202, 4
          %s205 = int_to_ptr.hbm [resolvable:$true] %s204
          %s206 = sshll.u32 %s191, 4
          %s207 = int_to_ptr.vmem [resolvable:$true] %s206
          %s208 = sshll.u32 %s203, 4
          %212 = dma.hbm_to_vmem [thread:$0]  (%p200), %s205, %s208, %s207, %s188, 128, 128, 8
        $region36: #{autoencoder_forward.1} parent=31 // pred_fallthru
          _
      $region32: #{autoencoder_forward.1} parent=5 // pred_fallthru
        _
      %p213 = scmp.le.s32.totalorder 1, %s17
      %p214 = scmp.lt.s32.totalorder %s17, 4
      %p215 = pnand %p213, %p214
      %p216 = pneg %p215
      // Predicated region
      $region37: #{autoencoder_forward.1} parent=5 // pred_check
        _
      $region38: #{autoencoder_forward.1} parent=5 // pred_check_branch
        %218 = sbr.rel (%p215) target = $region40
      $region39: #{autoencoder_forward.1} parent=5 // pred_region
        %s219 = ssub.s32 %s17, 1
        %s220 = sand.u32 %s30, 1
        %s221 = scalar_lea.sflag [#allocation3], %s220
        %s222 = sand.u32 %s30, 1
        %s223 = smul.addr %s222, 256
        %s224 = scalar_lea.vmem [#allocation2], %s223
        // Predicated region
        $region41: #{autoencoder_forward.1} parent=39 // pred_check
          %p225 = pneg %p43
        $region42: #{autoencoder_forward.1} parent=39 // pred_check_branch
          %227 = sbr.rel (%p225) target = $region44
        $region43: #{autoencoder_forward.1} parent=39 // pred_region
          %229 = dma.done %s221, 4096
        $region44: #{autoencoder_forward.1} parent=39 // pred_fallthru
          _
        %s230 = sand.u32 %s30, 1
        %s231 = scalar_lea.sflag [#allocation3], %s230
        %s232 = sand.u32 %s30, 1
        %s233 = smul.addr %s232, 256
        %s234 = scalar_lea.vmem [#allocation2], %s233
        %p235 = pneg %p43
        %p236 = pneg %p40
        %p237 = pneg %p64
        %p238 = pneg %p61
        %p239 = pneg %p85
        %p240 = pneg %p82
        %p241 = pneg %p106
        %p242 = pneg %p103
        %p243 = pneg %p127
        %p244 = pneg %p124
        %p245 = pneg %p153
        %p246 = pneg %p150
        %s247 = sand.u32 %s140, 1
        %s248 = scalar_lea.sflag [#allocation4], %s247
        %s249 = sand.u32 %s140, 1
        %s250 = smul.addr %s249, 256
        %s251 = scalar_lea.vmem [#allocation5], %s250
        %s252 = smul.u32 32, %s22
        %s253 = ssub.s32 75, %s252
        %p254 = scmp.lt.s32.totalorder %s253, 32
        %s255 = scalar_select %p254, %s253, 32
        %s256 = smul.u32 8, %s255
        %s257 = smul.u32 32, %s22
        %s258 = ssub.s32 75, %s257
        %p259 = scmp.lt.s32.totalorder %s258, 32
        %s260 = scalar_select %p259, %s258, 32
        %s261 = smul.u32 8, %s260
        %v263 = vld [vmem:[%s224] sm:$0xff]
        %v264 = vld [vmem:[%s224 + $0x8] sm:$0xff]
        %v265 = vld [vmem:[%s224 + $0x10] sm:$0xff]
        %v266 = vld [vmem:[%s224 + $0x18] sm:$0xff]
        %v267 = vld [vmem:[%s224 + $0x20] sm:$0xff]
        %v268 = vld [vmem:[%s224 + $0x28] sm:$0xff]
        %v269 = vld [vmem:[%s224 + $0x30] sm:$0xff]
        %v270 = vld [vmem:[%s224 + $0x38] sm:$0xff]
        %v271 = vld [vmem:[%s224 + $0x40] sm:$0xff]
        %v272 = vld [vmem:[%s224 + $0x48] sm:$0xff]
        %v273 = vld [vmem:[%s224 + $0x50] sm:$0xff]
        %v274 = vld [vmem:[%s224 + $0x58] sm:$0xff]
        %v275 = vld [vmem:[%s224 + $0x60] sm:$0xff]
        %v276 = vld [vmem:[%s224 + $0x68] sm:$0xff]
        %v277 = vld [vmem:[%s224 + $0x70] sm:$0xff]
        %v278 = vld [vmem:[%s224 + $0x78] sm:$0xff]
        %v279 = vld [vmem:[%s224 + $0x80] sm:$0xff]
        %v280 = vld [vmem:[%s224 + $0x88] sm:$0xff]
        %v281 = vld [vmem:[%s224 + $0x90] sm:$0xff]
        %v282 = vld [vmem:[%s224 + $0x98] sm:$0xff]
        %v283 = vld [vmem:[%s224 + $0xa0] sm:$0xff]
        %v284 = vld [vmem:[%s224 + $0xa8] sm:$0xff]
        %v285 = vld [vmem:[%s224 + $0xb0] sm:$0xff]
        %v286 = vld [vmem:[%s224 + $0xb8] sm:$0xff]
        %v287 = vld [vmem:[%s224 + $0xc0] sm:$0xff]
        %v288 = vld [vmem:[%s224 + $0xc8] sm:$0xff]
        %v289 = vld [vmem:[%s224 + $0xd0] sm:$0xff]
        %v290 = vld [vmem:[%s224 + $0xd8] sm:$0xff]
        %v291 = vld [vmem:[%s224 + $0xe0] sm:$0xff]
        %v292 = vld [vmem:[%s224 + $0xe8] sm:$0xff]
        %v293 = vld [vmem:[%s224 + $0xf0] sm:$0xff]
        %v294 = vld [vmem:[%s224 + $0xf8] sm:$0xff]
        %v295 = vpack.c.bf16 %v264, %v263
        %v296 = vpack.c.bf16 %v266, %v265
        %v297 = vpack.c.bf16 %v268, %v267
        %v298 = vpack.c.bf16 %v270, %v269
        %v299 = vpack.c.bf16 %v272, %v271
        %v300 = vpack.c.bf16 %v274, %v273
        %v301 = vpack.c.bf16 %v276, %v275
        %v302 = vpack.c.bf16 %v278, %v277
        %v303 = vpack.c.bf16 %v280, %v279
        %v304 = vpack.c.bf16 %v282, %v281
        %v305 = vpack.c.bf16 %v284, %v283
        %v306 = vpack.c.bf16 %v286, %v285
        %v307 = vpack.c.bf16 %v288, %v287
        %v308 = vpack.c.bf16 %v290, %v289
        %v309 = vpack.c.bf16 %v292, %v291
        %v310 = vpack.c.bf16 %v294, %v293
        %v311 = vld [vmem:[%s1] sm:$0xf]
        %v312 = vld [vmem:[%s1 + $0x4] sm:$0xf]
        %v313 = vld [vmem:[%s1 + $0x8] sm:$0xf]
        %v314 = vld [vmem:[%s1 + $0xc] sm:$0xf]
        %v315 = vld [vmem:[%s1 + $0x10] sm:$0xf]
        %v316 = vld [vmem:[%s1 + $0x14] sm:$0xf]
        %v317 = vld [vmem:[%s1 + $0x18] sm:$0xf]
        %v318 = vld [vmem:[%s1 + $0x1c] sm:$0xf]
        %v319 = vld [vmem:[%s1 + $0x20] sm:$0xf]
        %v320 = vld [vmem:[%s1 + $0x24] sm:$0xf]
        %v321 = vld [vmem:[%s1 + $0x28] sm:$0xf]
        %v322 = vld [vmem:[%s1 + $0x2c] sm:$0xf]
        %v323 = vld [vmem:[%s1 + $0x30] sm:$0xf]
        %v324 = vld [vmem:[%s1 + $0x34] sm:$0xf]
        %v325 = vld [vmem:[%s1 + $0x38] sm:$0xf]
        %v326 = vld [vmem:[%s1 + $0x3c] sm:$0xf]
        %v327 = vld [vmem:[%s2] sm:$0x1]
        %v329 = vperm.slane %v327, 0
        %v347 = vunpack.c.l.b16 %v311
        %v348 = vunpack.c.l.b16 %v312
        %v349 = vunpack.c.l.b16 %v313
        %v350 = vunpack.c.l.b16 %v314
        %v351 = vunpack.c.l.b16 %v315
        %v352 = vunpack.c.l.b16 %v316
        %v353 = vunpack.c.l.b16 %v317
        %v354 = vunpack.c.l.b16 %v318
        %v355 = vunpack.c.l.b16 %v319
        %v356 = vunpack.c.l.b16 %v320
        %v357 = vunpack.c.l.b16 %v321
        %v358 = vunpack.c.l.b16 %v322
        %v359 = vunpack.c.l.b16 %v323
        %v360 = vunpack.c.l.b16 %v324
        %v361 = vunpack.c.l.b16 %v325
        %v362 = vunpack.c.l.b16 %v326
        %v363 = vpack.c.b16 %v348, %v347
        %v364 = vpack.c.b16 %v350, %v349
        %v365 = vpack.c.b16 %v352, %v351
        %v366 = vpack.c.b16 %v354, %v353
        %v367 = vpack.c.b16 %v356, %v355
        %v368 = vpack.c.b16 %v358, %v357
        %v369 = vpack.c.b16 %v360, %v359
        %v370 = vpack.c.b16 %v362, %v361
        %379 = vmatpush.bf16.msra.mxu0 %v370
        %380 = vmatpush.bf16.msra.mxu0 %v369
        %381 = vmatpush.bf16.msra.mxu0 %v368
        %382 = vmatpush.bf16.msra.mxu0 %v367
        %383 = vmatpush.bf16.msra.mxu0 %v366
        %384 = vmatpush.bf16.msra.mxu0 %v365
        %385 = vmatpush.bf16.msra.mxu0 %v364
        %386 = vmatpush.bf16.msra.mxu0 %v363
        %387 = vmatmul.bf16.gmra.mxu0 %v295
        %v388 = vpop.f32.mrf.mxu0
        %v389 = vadd.f32 %v329, %v388
        %v390 = vpop.f32.mrf.mxu0
        %v391 = vadd.f32 %v329, %v390
        %392 = vmatmul.bf16.gmra.mxu0 %v296
        %v393 = vpop.f32.mrf.mxu0
        %v394 = vadd.f32 %v329, %v393
        %v395 = vpop.f32.mrf.mxu0
        %v396 = vadd.f32 %v329, %v395
        %397 = vmatmul.bf16.gmra.mxu0 %v297
        %v398 = vpop.f32.mrf.mxu0
        %v399 = vadd.f32 %v329, %v398
        %v400 = vpop.f32.mrf.mxu0
        %v401 = vadd.f32 %v329, %v400
        %402 = vmatmul.bf16.gmra.mxu0 %v298
        %v403 = vpop.f32.mrf.mxu0
        %v404 = vadd.f32 %v329, %v403
        %v405 = vpop.f32.mrf.mxu0
        %v406 = vadd.f32 %v329, %v405
        %407 = vmatmul.bf16.gmra.mxu0 %v299
        %v408 = vpop.f32.mrf.mxu0
        %v409 = vadd.f32 %v329, %v408
        %v410 = vpop.f32.mrf.mxu0
        %v411 = vadd.f32 %v329, %v410
        %412 = vmatmul.bf16.gmra.mxu0 %v300
        %v413 = vpop.f32.mrf.mxu0
        %v414 = vadd.f32 %v329, %v413
        %v415 = vpop.f32.mrf.mxu0
        %v416 = vadd.f32 %v329, %v415
        %417 = vmatmul.bf16.gmra.mxu0 %v301
        %v418 = vpop.f32.mrf.mxu0
        %v419 = vadd.f32 %v329, %v418
        %v420 = vpop.f32.mrf.mxu0
        %v421 = vadd.f32 %v329, %v420
        %422 = vmatmul.bf16.gmra.mxu0 %v302
        %v423 = vpop.f32.mrf.mxu0
        %v424 = vadd.f32 %v329, %v423
        %v425 = vpop.f32.mrf.mxu0
        %v426 = vadd.f32 %v329, %v425
        %427 = vmatmul.bf16.gmra.mxu0 %v303
        %v428 = vpop.f32.mrf.mxu0
        %v429 = vadd.f32 %v329, %v428
        %v430 = vpop.f32.mrf.mxu0
        %v431 = vadd.f32 %v329, %v430
        %432 = vmatmul.bf16.gmra.mxu0 %v304
        %v433 = vpop.f32.mrf.mxu0
        %v434 = vadd.f32 %v329, %v433
        %v435 = vpop.f32.mrf.mxu0
        %v436 = vadd.f32 %v329, %v435
        %437 = vmatmul.bf16.gmra.mxu0 %v305
        %v438 = vpop.f32.mrf.mxu0
        %v439 = vadd.f32 %v329, %v438
        %v440 = vpop.f32.mrf.mxu0
        %v441 = vadd.f32 %v329, %v440
        %442 = vmatmul.bf16.gmra.mxu0 %v306
        %v443 = vpop.f32.mrf.mxu0
        %v444 = vadd.f32 %v329, %v443
        %v445 = vpop.f32.mrf.mxu0
        %v446 = vadd.f32 %v329, %v445
        %447 = vmatmul.bf16.gmra.mxu0 %v307
        %v448 = vpop.f32.mrf.mxu0
        %v449 = vadd.f32 %v329, %v448
        %v450 = vpop.f32.mrf.mxu0
        %v451 = vadd.f32 %v329, %v450
        %452 = vmatmul.bf16.gmra.mxu0 %v308
        %v453 = vpop.f32.mrf.mxu0
        %v454 = vadd.f32 %v329, %v453
        %v455 = vpop.f32.mrf.mxu0
        %v456 = vadd.f32 %v329, %v455
        %457 = vmatmul.bf16.gmra.mxu0 %v309
        %v458 = vpop.f32.mrf.mxu0
        %v459 = vadd.f32 %v329, %v458
        %v460 = vpop.f32.mrf.mxu0
        %v461 = vadd.f32 %v329, %v460
        %462 = vmatmul.bf16.gmra.mxu0 %v310
        %v463 = vpop.f32.mrf.mxu0
        %v464 = vadd.f32 %v329, %v463
        %v465 = vpop.f32.mrf.mxu0
        %v466 = vadd.f32 %v329, %v465
        %467 = vdwg.mxu0
        %v468 = vmul.f32 %v389, 0.5
        %v469 = vmul.f32 %v391, 0.5
        %v470 = vmul.f32 %v394, 0.5
        %v471 = vmul.f32 %v396, 0.5
        %v472 = vmul.f32 %v399, 0.5
        %v473 = vmul.f32 %v401, 0.5
        %v474 = vmul.f32 %v404, 0.5
        %v475 = vmul.f32 %v406, 0.5
        %v476 = vmul.f32 %v409, 0.5
        %v477 = vmul.f32 %v411, 0.5
        %v478 = vmul.f32 %v414, 0.5
        %v479 = vmul.f32 %v416, 0.5
        %v480 = vmul.f32 %v419, 0.5
        %v481 = vmul.f32 %v421, 0.5
        %v482 = vmul.f32 %v424, 0.5
        %v483 = vmul.f32 %v426, 0.5
        %v484 = vmul.f32 %v429, 0.5
        %v485 = vmul.f32 %v431, 0.5
        %v486 = vmul.f32 %v434, 0.5
        %v487 = vmul.f32 %v436, 0.5
        %v488 = vmul.f32 %v439, 0.5
        %v489 = vmul.f32 %v441, 0.5
        %v490 = vmul.f32 %v444, 0.5
        %v491 = vmul.f32 %v446, 0.5
        %v492 = vmul.f32 %v449, 0.5
        %v493 = vmul.f32 %v451, 0.5
        %v494 = vmul.f32 %v454, 0.5
        %v495 = vmul.f32 %v456, 0.5
        %v496 = vmul.f32 %v459, 0.5
        %v497 = vmul.f32 %v461, 0.5
        %v498 = vmul.f32 %v464, 0.5
        %v499 = vmul.f32 %v466, 0.5
        %v500 = vtanh.pop %v468
        %v501 = vtanh.pop %v469
        %v502 = vtanh.pop %v470
        %v503 = vtanh.pop %v471
        %v504 = vtanh.pop %v472
        %v505 = vtanh.pop %v473
        %v506 = vtanh.pop %v474
        %v507 = vtanh.pop %v475
        %v508 = vtanh.pop %v476
        %v509 = vtanh.pop %v477
        %v510 = vtanh.pop %v478
        %v511 = vtanh.pop %v479
        %v512 = vtanh.pop %v480
        %v513 = vtanh.pop %v481
        %v514 = vtanh.pop %v482
        %v515 = vtanh.pop %v483
        %v516 = vtanh.pop %v484
        %v517 = vtanh.pop %v485
        %v518 = vtanh.pop %v486
        %v519 = vtanh.pop %v487
        %v520 = vtanh.pop %v488
        %v521 = vtanh.pop %v489
        %v522 = vtanh.pop %v490
        %v523 = vtanh.pop %v491
        %v524 = vtanh.pop %v492
        %v525 = vtanh.pop %v493
        %v526 = vtanh.pop %v494
        %v527 = vtanh.pop %v495
        %v528 = vtanh.pop %v496
        %v529 = vtanh.pop %v497
        %v530 = vtanh.pop %v498
        %v531 = vtanh.pop %v499
        %v532 = vmul.f32 %v500, 0.5
        %v533 = vmul.f32 %v501, 0.5
        %v534 = vmul.f32 %v502, 0.5
        %v535 = vmul.f32 %v503, 0.5
        %v536 = vmul.f32 %v504, 0.5
        %v537 = vmul.f32 %v505, 0.5
        %v538 = vmul.f32 %v506, 0.5
        %v539 = vmul.f32 %v507, 0.5
        %v540 = vmul.f32 %v508, 0.5
        %v541 = vmul.f32 %v509, 0.5
        %v542 = vmul.f32 %v510, 0.5
        %v543 = vmul.f32 %v511, 0.5
        %v544 = vmul.f32 %v512, 0.5
        %v545 = vmul.f32 %v513, 0.5
        %v546 = vmul.f32 %v514, 0.5
        %v547 = vmul.f32 %v515, 0.5
        %v548 = vmul.f32 %v516, 0.5
        %v549 = vmul.f32 %v517, 0.5
        %v550 = vmul.f32 %v518, 0.5
        %v551 = vmul.f32 %v519, 0.5
        %v552 = vmul.f32 %v520, 0.5
        %v553 = vmul.f32 %v521, 0.5
        %v554 = vmul.f32 %v522, 0.5
        %v555 = vmul.f32 %v523, 0.5
        %v556 = vmul.f32 %v524, 0.5
        %v557 = vmul.f32 %v525, 0.5
        %v558 = vmul.f32 %v526, 0.5
        %v559 = vmul.f32 %v527, 0.5
        %v560 = vmul.f32 %v528, 0.5
        %v561 = vmul.f32 %v529, 0.5
        %v562 = vmul.f32 %v530, 0.5
        %v563 = vmul.f32 %v531, 0.5
        %v564 = vadd.f32 %v532, 0.5
        %v565 = vadd.f32 %v533, 0.5
        %v566 = vadd.f32 %v534, 0.5
        %v567 = vadd.f32 %v535, 0.5
        %v568 = vadd.f32 %v536, 0.5
        %v569 = vadd.f32 %v537, 0.5
        %v570 = vadd.f32 %v538, 0.5
        %v571 = vadd.f32 %v539, 0.5
        %v572 = vadd.f32 %v540, 0.5
        %v573 = vadd.f32 %v541, 0.5
        %v574 = vadd.f32 %v542, 0.5
        %v575 = vadd.f32 %v543, 0.5
        %v576 = vadd.f32 %v544, 0.5
        %v577 = vadd.f32 %v545, 0.5
        %v578 = vadd.f32 %v546, 0.5
        %v579 = vadd.f32 %v547, 0.5
        %v580 = vadd.f32 %v548, 0.5
        %v581 = vadd.f32 %v549, 0.5
        %v582 = vadd.f32 %v550, 0.5
        %v583 = vadd.f32 %v551, 0.5
        %v584 = vadd.f32 %v552, 0.5
        %v585 = vadd.f32 %v553, 0.5
        %v586 = vadd.f32 %v554, 0.5
        %v587 = vadd.f32 %v555, 0.5
        %v588 = vadd.f32 %v556, 0.5
        %v589 = vadd.f32 %v557, 0.5
        %v590 = vadd.f32 %v558, 0.5
        %v591 = vadd.f32 %v559, 0.5
        %v592 = vadd.f32 %v560, 0.5
        %v593 = vadd.f32 %v561, 0.5
        %v594 = vadd.f32 %v562, 0.5
        %v595 = vadd.f32 %v563, 0.5
        %v596 = vpack.c.bf16 %v565, %v564
        %v597 = vpack.c.bf16 %v567, %v566
        %v598 = vpack.c.bf16 %v569, %v568
        %v599 = vpack.c.bf16 %v571, %v570
        %v600 = vpack.c.bf16 %v573, %v572
        %v601 = vpack.c.bf16 %v575, %v574
        %v602 = vpack.c.bf16 %v577, %v576
        %v603 = vpack.c.bf16 %v579, %v578
        %v604 = vpack.c.bf16 %v581, %v580
        %v605 = vpack.c.bf16 %v583, %v582
        %v606 = vpack.c.bf16 %v585, %v584
        %v607 = vpack.c.bf16 %v587, %v586
        %v608 = vpack.c.bf16 %v589, %v588
        %v609 = vpack.c.bf16 %v591, %v590
        %v610 = vpack.c.bf16 %v593, %v592
        %v611 = vpack.c.bf16 %v595, %v594
        %v612 = vld [vmem:[%s3] sm:$0xf]
        %v613 = vld [vmem:[%s3 + $0x4] sm:$0xf]
        %v614 = vld [vmem:[%s3 + $0x8] sm:$0xf]
        %v615 = vld [vmem:[%s3 + $0xc] sm:$0xf]
        %v616 = vld [vmem:[%s4] sm:$0x1]
        %v618 = vperm.slane %v616, 0
        %v624 = vunpack.c.l.b16 %v612
        %v625 = vunpack.c.l.b16 %v613
        %v626 = vunpack.c.l.b16 %v614
        %v627 = vunpack.c.l.b16 %v615
        %v628 = vpack.c.b16 %v625, %v624
        %v629 = vpack.c.b16 %v627, %v626
        %vm632 = vcmask 261120
        %v634 = vsel %vm632, %v596, 0
        %v637 = vsel %vm632, %v597, 0
        %v640 = vsel %vm632, %v598, 0
        %v643 = vsel %vm632, %v599, 0
        %v646 = vsel %vm632, %v600, 0
        %v649 = vsel %vm632, %v601, 0
        %v652 = vsel %vm632, %v602, 0
        %v655 = vsel %vm632, %v603, 0
        %v658 = vsel %vm632, %v604, 0
        %v661 = vsel %vm632, %v605, 0
        %v664 = vsel %vm632, %v606, 0
        %v667 = vsel %vm632, %v607, 0
        %v670 = vsel %vm632, %v608, 0
        %v673 = vsel %vm632, %v609, 0
        %v676 = vsel %vm632, %v610, 0
        %v679 = vsel %vm632, %v611, 0
        %681 = vmatpush.bf16.msra.mxu0 0
        %682 = vmatpush.bf16.msra.mxu0 0
        %683 = vmatpush.bf16.msra.mxu0 0
        %684 = vmatpush.bf16.msra.mxu0 0
        %685 = vmatpush.bf16.msra.mxu0 0
        %686 = vmatpush.bf16.msra.mxu0 0
        %687 = vmatpush.bf16.msra.mxu0 %v629
        %688 = vmatpush.bf16.msra.mxu0 %v628
        %689 = vmatmul.bf16.gmra.mxu0 %v634
        %v690 = vpop.f32.mrf.mxu0
        %v691 = vadd.f32 %v618, %v690
        %v692 = vpop.f32.mrf.mxu0
        %v693 = vadd.f32 %v618, %v692
        %694 = vmatmul.bf16.gmra.mxu0 %v637
        %v695 = vpop.f32.mrf.mxu0
        %v696 = vadd.f32 %v618, %v695
        %v697 = vpop.f32.mrf.mxu0
        %v698 = vadd.f32 %v618, %v697
        %699 = vmatmul.bf16.gmra.mxu0 %v640
        %v700 = vpop.f32.mrf.mxu0
        %v701 = vadd.f32 %v618, %v700
        %v702 = vpop.f32.mrf.mxu0
        %v703 = vadd.f32 %v618, %v702
        %704 = vmatmul.bf16.gmra.mxu0 %v643
        %v705 = vpop.f32.mrf.mxu0
        %v706 = vadd.f32 %v618, %v705
        %v707 = vpop.f32.mrf.mxu0
        %v708 = vadd.f32 %v618, %v707
        %709 = vmatmul.bf16.gmra.mxu0 %v646
        %v710 = vpop.f32.mrf.mxu0
        %v711 = vadd.f32 %v618, %v710
        %v712 = vpop.f32.mrf.mxu0
        %v713 = vadd.f32 %v618, %v712
        %714 = vmatmul.bf16.gmra.mxu0 %v649
        %v715 = vpop.f32.mrf.mxu0
        %v716 = vadd.f32 %v618, %v715
        %v717 = vpop.f32.mrf.mxu0
        %v718 = vadd.f32 %v618, %v717
        %719 = vmatmul.bf16.gmra.mxu0 %v652
        %v720 = vpop.f32.mrf.mxu0
        %v721 = vadd.f32 %v618, %v720
        %v722 = vpop.f32.mrf.mxu0
        %v723 = vadd.f32 %v618, %v722
        %724 = vmatmul.bf16.gmra.mxu0 %v655
        %v725 = vpop.f32.mrf.mxu0
        %v726 = vadd.f32 %v618, %v725
        %v727 = vpop.f32.mrf.mxu0
        %v728 = vadd.f32 %v618, %v727
        %729 = vmatmul.bf16.gmra.mxu0 %v658
        %v730 = vpop.f32.mrf.mxu0
        %v731 = vadd.f32 %v618, %v730
        %v732 = vpop.f32.mrf.mxu0
        %v733 = vadd.f32 %v618, %v732
        %734 = vmatmul.bf16.gmra.mxu0 %v661
        %v735 = vpop.f32.mrf.mxu0
        %v736 = vadd.f32 %v618, %v735
        %v737 = vpop.f32.mrf.mxu0
        %v738 = vadd.f32 %v618, %v737
        %739 = vmatmul.bf16.gmra.mxu0 %v664
        %v740 = vpop.f32.mrf.mxu0
        %v741 = vadd.f32 %v618, %v740
        %v742 = vpop.f32.mrf.mxu0
        %v743 = vadd.f32 %v618, %v742
        %744 = vmatmul.bf16.gmra.mxu0 %v667
        %v745 = vpop.f32.mrf.mxu0
        %v746 = vadd.f32 %v618, %v745
        %v747 = vpop.f32.mrf.mxu0
        %v748 = vadd.f32 %v618, %v747
        %749 = vmatmul.bf16.gmra.mxu0 %v670
        %v750 = vpop.f32.mrf.mxu0
        %v751 = vadd.f32 %v618, %v750
        %v752 = vpop.f32.mrf.mxu0
        %v753 = vadd.f32 %v618, %v752
        %754 = vmatmul.bf16.gmra.mxu0 %v673
        %v755 = vpop.f32.mrf.mxu0
        %v756 = vadd.f32 %v618, %v755
        %v757 = vpop.f32.mrf.mxu0
        %v758 = vadd.f32 %v618, %v757
        %759 = vmatmul.bf16.gmra.mxu0 %v676
        %v760 = vpop.f32.mrf.mxu0
        %v761 = vadd.f32 %v618, %v760
        %v762 = vpop.f32.mrf.mxu0
        %v763 = vadd.f32 %v618, %v762
        %764 = vmatmul.bf16.gmra.mxu0 %v679
        %v765 = vpop.f32.mrf.mxu0
        %v766 = vadd.f32 %v618, %v765
        %v767 = vpop.f32.mrf.mxu0
        %v768 = vadd.f32 %v618, %v767
        %769 = vdwg.mxu0
        %v770 = vmul.f32 %v691, 0.5
        %v771 = vmul.f32 %v693, 0.5
        %v772 = vmul.f32 %v696, 0.5
        %v773 = vmul.f32 %v698, 0.5
        %v774 = vmul.f32 %v701, 0.5
        %v775 = vmul.f32 %v703, 0.5
        %v776 = vmul.f32 %v706, 0.5
        %v777 = vmul.f32 %v708, 0.5
        %v778 = vmul.f32 %v711, 0.5
        %v779 = vmul.f32 %v713, 0.5
        %v780 = vmul.f32 %v716, 0.5
        %v781 = vmul.f32 %v718, 0.5
        %v782 = vmul.f32 %v721, 0.5
        %v783 = vmul.f32 %v723, 0.5
        %v784 = vmul.f32 %v726, 0.5
        %v785 = vmul.f32 %v728, 0.5
        %v786 = vmul.f32 %v731, 0.5
        %v787 = vmul.f32 %v733, 0.5
        %v788 = vmul.f32 %v736, 0.5
        %v789 = vmul.f32 %v738, 0.5
        %v790 = vmul.f32 %v741, 0.5
        %v791 = vmul.f32 %v743, 0.5
        %v792 = vmul.f32 %v746, 0.5
        %v793 = vmul.f32 %v748, 0.5
        %v794 = vmul.f32 %v751, 0.5
        %v795 = vmul.f32 %v753, 0.5
        %v796 = vmul.f32 %v756, 0.5
        %v797 = vmul.f32 %v758, 0.5
        %v798 = vmul.f32 %v761, 0.5
        %v799 = vmul.f32 %v763, 0.5
        %v800 = vmul.f32 %v766, 0.5
        %v801 = vmul.f32 %v768, 0.5
        %v802 = vtanh.pop %v770
        %v803 = vtanh.pop %v771
        %v804 = vtanh.pop %v772
        %v805 = vtanh.pop %v773
        %v806 = vtanh.pop %v774
        %v807 = vtanh.pop %v775
        %v808 = vtanh.pop %v776
        %v809 = vtanh.pop %v777
        %v810 = vtanh.pop %v778
        %v811 = vtanh.pop %v779
        %v812 = vtanh.pop %v780
        %v813 = vtanh.pop %v781
        %v814 = vtanh.pop %v782
        %v815 = vtanh.pop %v783
        %v816 = vtanh.pop %v784
        %v817 = vtanh.pop %v785
        %v818 = vtanh.pop %v786
        %v819 = vtanh.pop %v787
        %v820 = vtanh.pop %v788
        %v821 = vtanh.pop %v789
        %v822 = vtanh.pop %v790
        %v823 = vtanh.pop %v791
        %v824 = vtanh.pop %v792
        %v825 = vtanh.pop %v793
        %v826 = vtanh.pop %v794
        %v827 = vtanh.pop %v795
        %v828 = vtanh.pop %v796
        %v829 = vtanh.pop %v797
        %v830 = vtanh.pop %v798
        %v831 = vtanh.pop %v799
        %v832 = vtanh.pop %v800
        %v833 = vtanh.pop %v801
        %v834 = vmul.f32 %v802, 0.5
        %v835 = vmul.f32 %v803, 0.5
        %v836 = vmul.f32 %v804, 0.5
        %v837 = vmul.f32 %v805, 0.5
        %v838 = vmul.f32 %v806, 0.5
        %v839 = vmul.f32 %v807, 0.5
        %v840 = vmul.f32 %v808, 0.5
        %v841 = vmul.f32 %v809, 0.5
        %v842 = vmul.f32 %v810, 0.5
        %v843 = vmul.f32 %v811, 0.5
        %v844 = vmul.f32 %v812, 0.5
        %v845 = vmul.f32 %v813, 0.5
        %v846 = vmul.f32 %v814, 0.5
        %v847 = vmul.f32 %v815, 0.5
        %v848 = vmul.f32 %v816, 0.5
        %v849 = vmul.f32 %v817, 0.5
        %v850 = vmul.f32 %v818, 0.5
        %v851 = vmul.f32 %v819, 0.5
        %v852 = vmul.f32 %v820, 0.5
        %v853 = vmul.f32 %v821, 0.5
        %v854 = vmul.f32 %v822, 0.5
        %v855 = vmul.f32 %v823, 0.5
        %v856 = vmul.f32 %v824, 0.5
        %v857 = vmul.f32 %v825, 0.5
        %v858 = vmul.f32 %v826, 0.5
        %v859 = vmul.f32 %v827, 0.5
        %v860 = vmul.f32 %v828, 0.5
        %v861 = vmul.f32 %v829, 0.5
        %v862 = vmul.f32 %v830, 0.5
        %v863 = vmul.f32 %v831, 0.5
        %v864 = vmul.f32 %v832, 0.5
        %v865 = vmul.f32 %v833, 0.5
        %v866 = vadd.f32 %v834, 0.5
        %v867 = vadd.f32 %v835, 0.5
        %v868 = vadd.f32 %v836, 0.5
        %v869 = vadd.f32 %v837, 0.5
        %v870 = vadd.f32 %v838, 0.5
        %v871 = vadd.f32 %v839, 0.5
        %v872 = vadd.f32 %v840, 0.5
        %v873 = vadd.f32 %v841, 0.5
        %v874 = vadd.f32 %v842, 0.5
        %v875 = vadd.f32 %v843, 0.5
        %v876 = vadd.f32 %v844, 0.5
        %v877 = vadd.f32 %v845, 0.5
        %v878 = vadd.f32 %v846, 0.5
        %v879 = vadd.f32 %v847, 0.5
        %v880 = vadd.f32 %v848, 0.5
        %v881 = vadd.f32 %v849, 0.5
        %v882 = vadd.f32 %v850, 0.5
        %v883 = vadd.f32 %v851, 0.5
        %v884 = vadd.f32 %v852, 0.5
        %v885 = vadd.f32 %v853, 0.5
        %v886 = vadd.f32 %v854, 0.5
        %v887 = vadd.f32 %v855, 0.5
        %v888 = vadd.f32 %v856, 0.5
        %v889 = vadd.f32 %v857, 0.5
        %v890 = vadd.f32 %v858, 0.5
        %v891 = vadd.f32 %v859, 0.5
        %v892 = vadd.f32 %v860, 0.5
        %v893 = vadd.f32 %v861, 0.5
        %v894 = vadd.f32 %v862, 0.5
        %v895 = vadd.f32 %v863, 0.5
        %v896 = vadd.f32 %v864, 0.5
        %v897 = vadd.f32 %v865, 0.5
        %898 = vst [vmem:[%s251] sm:$0xff] %v866
        %899 = vst [vmem:[%s251 + $0x8] sm:$0xff] %v867
        %900 = vst [vmem:[%s251 + $0x10] sm:$0xff] %v868
        %901 = vst [vmem:[%s251 + $0x18] sm:$0xff] %v869
        %902 = vst [vmem:[%s251 + $0x20] sm:$0xff] %v870
        %903 = vst [vmem:[%s251 + $0x28] sm:$0xff] %v871
        %904 = vst [vmem:[%s251 + $0x30] sm:$0xff] %v872
        %905 = vst [vmem:[%s251 + $0x38] sm:$0xff] %v873
        %906 = vst [vmem:[%s251 + $0x40] sm:$0xff] %v874
        %907 = vst [vmem:[%s251 + $0x48] sm:$0xff] %v875
        %908 = vst [vmem:[%s251 + $0x50] sm:$0xff] %v876
        %909 = vst [vmem:[%s251 + $0x58] sm:$0xff] %v877
        %910 = vst [vmem:[%s251 + $0x60] sm:$0xff] %v878
        %911 = vst [vmem:[%s251 + $0x68] sm:$0xff] %v879
        %912 = vst [vmem:[%s251 + $0x70] sm:$0xff] %v880
        %913 = vst [vmem:[%s251 + $0x78] sm:$0xff] %v881
        %914 = vst [vmem:[%s251 + $0x80] sm:$0xff] %v882
        %915 = vst [vmem:[%s251 + $0x88] sm:$0xff] %v883
        %916 = vst [vmem:[%s251 + $0x90] sm:$0xff] %v884
        %917 = vst [vmem:[%s251 + $0x98] sm:$0xff] %v885
        %918 = vst [vmem:[%s251 + $0xa0] sm:$0xff] %v886
        %919 = vst [vmem:[%s251 + $0xa8] sm:$0xff] %v887
        %920 = vst [vmem:[%s251 + $0xb0] sm:$0xff] %v888
        %921 = vst [vmem:[%s251 + $0xb8] sm:$0xff] %v889
        %922 = vst [vmem:[%s251 + $0xc0] sm:$0xff] %v890
        %923 = vst [vmem:[%s251 + $0xc8] sm:$0xff] %v891
        %924 = vst [vmem:[%s251 + $0xd0] sm:$0xff] %v892
        %925 = vst [vmem:[%s251 + $0xd8] sm:$0xff] %v893
        %926 = vst [vmem:[%s251 + $0xe0] sm:$0xff] %v894
        %927 = vst [vmem:[%s251 + $0xe8] sm:$0xff] %v895
        %928 = vst [vmem:[%s251 + $0xf0] sm:$0xff] %v896
        %929 = vst [vmem:[%s251 + $0xf8] sm:$0xff] %v897
        %s930 = sand.u32 %s140, 1
        %s931 = scalar_lea.sflag [#allocation4], %s930
        %s932 = sand.u32 %s140, 1
        %s933 = smul.addr %s932, 256
        %s934 = scalar_lea.vmem [#allocation5], %s933
        // Predicated region
        $region45: #{autoencoder_forward.1} parent=39 // pred_check
          %p935 = pneg %p150
        $region46: #{autoencoder_forward.1} parent=39 // pred_check_branch
          %937 = sbr.rel (%p935) target = $region48
        $region47: #{autoencoder_forward.1} parent=39 // pred_region
          %s938 = smul.u32 32, %s22
          %s939 = ssub.s32 75, %s938
          %p940 = scmp.lt.s32.totalorder %s939, 32
          %s941 = scalar_select %p940, %s939, 32
          %s942 = smul.u32 8, %s941
          %s943 = ssub.s32 256, %s942
          %s944 = sshll.u32 %s943, 4
          %945 = vsyncadd %s931, %s944
          %p946 = scmp.ne.s32.totalorder 0, %s942
          %s947 = smul.addr %s938, 8
          %s948 = scalar_lea.hbm %s5, %s947
          %s949 = smul.u32 8, %s941
          %s950 = sshll.u32 %s934, 4
          %s951 = int_to_ptr.vmem [resolvable:$true] %s950
          %s952 = sshll.u32 %s948, 4
          %s953 = int_to_ptr.hbm [resolvable:$true] %s952
          %s954 = sshll.u32 %s949, 4
          %958 = dma.vmem_to_hbm [thread:$0]  (%p946), %s951, %s954, %s953, %s931, 128, 128, 8
        $region48: #{autoencoder_forward.1} parent=39 // pred_fallthru
          _
      $region40: #{autoencoder_forward.1} parent=5 // pred_fallthru
        _
      %p959 = scmp.le.s32.totalorder 2, %s17
      // Predicated region
      $region49: #{autoencoder_forward.1} parent=5 // pred_check
        %p960 = pneg %p959
      $region50: #{autoencoder_forward.1} parent=5 // pred_check_branch
        %962 = sbr.rel (%p960) target = $region52
      $region51: #{autoencoder_forward.1} parent=5 // pred_region
        %s963 = ssub.s32 %s17, 2
        // Predicated region
        $region53: #{autoencoder_forward.1} parent=51 // pred_check
          %p964 = pneg %p156
        $region54: #{autoencoder_forward.1} parent=51 // pred_check_branch
          %966 = sbr.rel (%p964) target = $region56
        $region55: #{autoencoder_forward.1} parent=51 // pred_region
          %s967 = sand.u32 %s141, 1
          %s968 = scalar_lea.sflag [#allocation4], %s967
          %s969 = sand.u32 %s141, 1
          %s970 = smul.addr %s969, 256
          %s971 = scalar_lea.vmem [#allocation5], %s970
          %973 = dma.done %s968, 4096
        $region56: #{autoencoder_forward.1} parent=51 // pred_fallthru
          _
      $region52: #{autoencoder_forward.1} parent=5 // pred_fallthru
        _
    $region6: #{autoencoder_forward.1} parent=1 // loop_footer
      %s21 = sadd.s32 1, %s17
    $region7: #{autoencoder_forward.1} parent=1 // loop_footer_branch
      %16 = sbr.rel target = $region3
    $region8: #{autoencoder_forward.1} parent=1 // loop_exit
      _
    %974 = vsyncpa [#allocation3], 1
    %s975 = scalar_lea.sflag [#allocation3], 1
    %976 = vsyncpa %s975, 1
    %977 = vsyncpa [#allocation4], 1
    %s978 = scalar_lea.sflag [#allocation4], 1
    %979 = vsyncpa %s978, 1

</llo_original>
